<compile_context>
chip_gen: v6e
topology: v6e:2x2x1
jax: 0.10.0
libtpu: 0.0.40
codegen_flags: <defaults>
</compile_context>

<pallas_src>
import jax
import jax.numpy as jnp
from jax.experimental import pallas as pl
from jax.experimental.pallas import tpu as pltpu


def _affine_mod_kernel(alpha_ref, beta_ref, x_ref, o_ref):
    # alpha_ref / beta_ref: (1, 1, C)  per-batch modulation (already x.dtype)
    # x_ref / o_ref:        (1, TM, C) streamed activation tile
    # Minimal VPU body: one multiply + one add + one store per vreg.
    o_ref[...] = x_ref[...] * alpha_ref[...] + beta_ref[...]


def _vmem_capacity_bytes():
    """Best-effort query of per-core VMEM; conservative fallback (v7x)."""
    try:
        return int(pltpu.get_tpu_info().vmem_capacity_bytes)
    except Exception:
        return 64 << 20


def affine_mod(x, z, weight_alpha, bias_alpha, weight_beta=None, bias_beta=None,
               *, tm=None):
    """Pallas AffineMod forward.

    x: (B, ..., C) activations (feature dim last, as in the PyTorch module)
    z: (B, S) style vectors
    weight_alpha/beta: (C, S); bias_alpha/beta: (C,)
    weight_beta=None reproduces mod_bias=False (beta == 0; bias_beta, if
    passed, is intentionally ignored in that case).
    """
    x_shape = x.shape
    B = x_shape[0]
    C = x_shape[-1]
    S = z.shape[-1]

    x3 = x.reshape(B, -1, C)                       # (B, M, C)
    M = x3.shape[1]
    z2 = z.reshape(B, S).astype(jnp.float32)

    # --- Hoisted per-batch style projections (tiny matmuls, done once) -----
    alpha = z2 @ weight_alpha.astype(jnp.float32).T + bias_alpha.astype(jnp.float32)
    if weight_beta is not None:
        beta = z2 @ weight_beta.astype(jnp.float32).T + bias_beta.astype(jnp.float32)
    else:
        beta = jnp.zeros_like(alpha)               # mod_bias=False semantics
    alpha = alpha.astype(x.dtype).reshape(B, 1, C)
    beta = beta.astype(x.dtype).reshape(B, 1, C)

    # --- Generation-aware tile sizing --------------------------------------
    itemsize = jnp.dtype(x.dtype).itemsize
    sublane = {1: 32, 2: 16}.get(itemsize, 8)      # dtype-native sublane packing

    vmem_cap = _vmem_capacity_bytes()
    big_vmem = vmem_cap >= (100 << 20)             # v5e / v6e (128 MiB) vs v7x (64 MiB)
    tile_budget = (32 << 20) if big_vmem else (16 << 20)   # bytes for 2x x + 2x out tiles

    row_bytes = max(C * itemsize, 1)
    tm_cap = max(sublane, tile_budget // (4 * row_bytes))
    if tm is None:
        tm = tm_cap                                # default: as big as the budget allows
    tm = int(min(tm, tm_cap))
    if tm >= M:
        tm = M                                     # block == full dim (exempt from 8-rule)
    else:
        tm = max(sublane, (tm // sublane) * sublane)

    grid = (B, pl.cdiv(M, tm))                     # ragged last tile handled by Pallas

    tile_bytes = tm * C * itemsize
    vmem_needed = 4 * tile_bytes + 4 * C * itemsize + (1 << 20)
    vmem_ceiling = (100 << 20) if big_vmem else (48 << 20)
    vmem_limit = int(min(max(vmem_needed + (8 << 20), 32 << 20), vmem_ceiling))

    cost = pl.CostEstimate(
        flops=2 * B * M * C,
        transcendentals=0,
        bytes_accessed=(2 * B * M * C + 2 * B * C) * itemsize,
    )

    out3 = pl.pallas_call(
        _affine_mod_kernel,
        out_shape=jax.ShapeDtypeStruct((B, M, C), x.dtype),
        grid=grid,
        in_specs=[
            pl.BlockSpec((1, 1, C), lambda b, i: (b, 0, 0)),     # alpha (per batch)
            pl.BlockSpec((1, 1, C), lambda b, i: (b, 0, 0)),     # beta  (per batch)
            pl.BlockSpec((1, tm, C), lambda b, i: (b, i, 0)),    # x tile
        ],
        out_specs=pl.BlockSpec((1, tm, C), lambda b, i: (b, i, 0)),
        compiler_params=pltpu.CompilerParams(
            dimension_semantics=("parallel", "parallel"),
            vmem_limit_bytes=vmem_limit,
        ),
        cost_estimate=cost,
    )(alpha, beta, x3)

    return out3.reshape(*x_shape[:-1], C)


def affine_mod_reference(x, z, wa, ba, wb, bb):
    """Pure-JAX reference matching the PyTorch forward (mod_bias=True)."""
    x_shape = x.shape
    B, C = x_shape[0], x_shape[-1]
    x3 = x.reshape(B, -1, C).astype(jnp.float32)
    z2 = z.reshape(B, 1, -1).astype(jnp.float32)
    alpha = jnp.einsum("bns,cs->bnc", z2, wa) + ba        # (B, 1, C)
    beta = jnp.einsum("bns,cs->bnc", z2, wb) + bb         # (B, 1, C)
    out = x3 * alpha + beta
    return out.reshape(*x_shape[:-1], C).astype(x.dtype)


if __name__ == "__main__":
    key = jax.random.PRNGKey(0)
    B, H, W = 2, 16, 16
    in_features, style_features = 128, 32

    k1, k2, k3, k4 = jax.random.split(key, 4)
    # Deterministic "randn / sqrt(style_features)" init, as in the module.
    weight_alpha = (
        jax.random.normal(k1, (in_features, style_features), jnp.float32)
        / jnp.sqrt(jnp.float32(style_features))
    )
    bias_alpha = jnp.ones((in_features,), jnp.float32)
    weight_beta = (
        jax.random.normal(k2, (in_features, style_features), jnp.float32)
        / jnp.sqrt(jnp.float32(style_features))
    )
    bias_beta = jnp.zeros((in_features,), jnp.float32)

    x = jax.random.normal(k3, (B, H, W, in_features), jnp.float32)
    z = jax.random.normal(k4, (B, style_features), jnp.float32)

    out = affine_mod(x, z, weight_alpha, bias_alpha, weight_beta, bias_beta)
    out = jax.block_until_ready(out)

    ref = affine_mod_reference(x, z, weight_alpha, bias_alpha, weight_beta, bias_beta)
    assert out.shape == ref.shape
    assert jnp.allclose(out, ref, atol=1e-5, rtol=1e-5), "mismatch vs reference"

    # Also exercise the ragged-row-tile / non-128 channel path on a tiny case.
    x2 = jax.random.normal(k3, (B, 7, 11, in_features), jnp.float32)
    out2 = jax.block_until_ready(
        affine_mod(x2, z, weight_alpha, bias_alpha, weight_beta, bias_beta, tm=64)
    )
    ref2 = affine_mod_reference(x2, z, weight_alpha, bias_alpha, weight_beta, bias_beta)
    assert jnp.allclose(out2, ref2, atol=1e-5, rtol=1e-5), "ragged-tile mismatch"

    print("KERNEL_OK")
</pallas_src>

<mosaic_0001>
module attributes {stable_mosaic.version = 11 : i64} {
  func.func @_affine_mod_kernel(%arg0: i32, %arg1: i32, %arg2: memref<1x1x128xf32, #tpu.memory_space<vmem>>, %arg3: memref<1x1x128xf32, #tpu.memory_space<vmem>>, %arg4: memref<1x256x128xf32, #tpu.memory_space<vmem>>, %arg5: memref<1x256x128xf32, #tpu.memory_space<vmem>>) attributes {dimension_semantics = [#tpu.dimension_semantics<parallel>, #tpu.dimension_semantics<parallel>], iteration_bounds = array<i64: 2, 1>, scalar_prefetch = 0 : i64, scratch_operands = 0 : i64, tpu.core_type = #tpu.core_type<tc>, window_params = [{transform_indices = @transform_0, window_bounds = array<i64: 1, 1, 128>}, {transform_indices = @transform_1, window_bounds = array<i64: 1, 1, 128>}, {transform_indices = @transform_2, window_bounds = array<i64: 1, 256, 128>}, {transform_indices = @transform_3, window_bounds = array<i64: 1, 256, 128>}]} {
    %c0 = arith.constant 0 : index
    %c0_0 = arith.constant 0 : index
    %c0_1 = arith.constant 0 : index
    %0 = vector.load %arg4[%c0, %c0_0, %c0_1] : memref<1x256x128xf32, #tpu.memory_space<vmem>>, vector<1x256x128xf32>
    %c0_2 = arith.constant 0 : index
    %c0_3 = arith.constant 0 : index
    %c0_4 = arith.constant 0 : index
    %1 = vector.load %arg2[%c0_2, %c0_3, %c0_4] : memref<1x1x128xf32, #tpu.memory_space<vmem>>, vector<1x1x128xf32>
    %2 = vector.broadcast %1 : vector<1x1x128xf32> to vector<1x256x128xf32>
    %3 = arith.mulf %0, %2 : vector<1x256x128xf32>
    %c0_5 = arith.constant 0 : index
    %c0_6 = arith.constant 0 : index
    %c0_7 = arith.constant 0 : index
    %4 = vector.load %arg3[%c0_5, %c0_6, %c0_7] : memref<1x1x128xf32, #tpu.memory_space<vmem>>, vector<1x1x128xf32>
    %5 = vector.broadcast %4 : vector<1x1x128xf32> to vector<1x256x128xf32>
    %6 = arith.addf %3, %5 : vector<1x256x128xf32>
    %c0_8 = arith.constant 0 : index
    %c0_9 = arith.constant 0 : index
    %c0_10 = arith.constant 0 : index
    %7 = vector.load %arg5[%c0_8, %c0_9, %c0_10] : memref<1x256x128xf32, #tpu.memory_space<vmem>>, vector<1x256x128xf32>
    tpu.vector_store %arg5[%c0_8, %c0_9, %c0_10], %6 {strides = array<i32>} : memref<1x256x128xf32, #tpu.memory_space<vmem>>, vector<1x256x128xf32>,
    return
  }
  func.func @transform_0(%arg0: i32, %arg1: i32) -> (i32, i32, i32) {
    %c0_i32 = arith.constant 0 : i32
    %c0_i32_0 = arith.constant 0 : i32
    %c0_i32_1 = arith.constant 0 : i32
    return %arg0, %c0_i32, %c0_i32_0 : i32, i32, i32
  }
  func.func @transform_1(%arg0: i32, %arg1: i32) -> (i32, i32, i32) {
    %c0_i32 = arith.constant 0 : i32
    %c0_i32_0 = arith.constant 0 : i32
    %c0_i32_1 = arith.constant 0 : i32
    return %arg0, %c0_i32, %c0_i32_0 : i32, i32, i32
  }
  func.func @transform_2(%arg0: i32, %arg1: i32) -> (i32, i32, i32) {
    %c0_i32 = arith.constant 0 : i32
    %c0_i32_0 = arith.constant 0 : i32
    return %arg0, %arg1, %c0_i32 : i32, i32, i32
  }
  func.func @transform_3(%arg0: i32, %arg1: i32) -> (i32, i32, i32) {
    %c0_i32 = arith.constant 0 : i32
    %c0_i32_0 = arith.constant 0 : i32
    return %arg0, %arg1, %c0_i32 : i32, i32, i32
  }
}

</mosaic_0001>

<llo_original>
// kernel: tpu_custom_call.1
$region0: #{tpu_custom_call.1}
  #allocation0 [shape = 'u32[]', space=smem, size = 0x4, offset = 0x4, fixed_abs, tag = 'smem constant byte address 0x4 - core index']
  #allocation1 [shape = 'u32[144,128]{1,0:T(1,128)}', space=vmem, size = 0x12000, scoped, tag = 'internal scratch']
  %s0 = inlined_call_operand.hbm [shape: f32[2,1,128], index: 0, kind: input, shape index: {}]
  %s1 = inlined_call_operand.hbm [shape: f32[2,1,128], index: 1, kind: input, shape index: {}]
  %s2 = inlined_call_operand.hbm [shape: f32[2,256,128], index: 2, kind: input, shape index: {}]
  %s3 = inlined_call_operand.hbm [shape: f32[2,256,128], index: 3, kind: output, shape index: {}]
  %s4 = sld [smem:[#allocation0]]
  $region57: #{tpu_custom_call.1} parent=0
    _
  %s6 = ssub.s32 1, %s4
  %s7 = scalar_select 0, %s6, %s4
  $region1: #{tpu_custom_call.1} parent=0
    #allocation2 [shape = 'u8[1024]{0}', space=vmem, size = 0x400, scoped, tag = 'input window, operand 0']
    #allocation3 [shape = 's32[2]{0}', space=sflag, size = 0x8, scoped, tag = 'scoped memory for tpu_custom_call.1']
    #allocation4 [shape = 's32[2]{0}', space=sflag, size = 0x8, scoped, tag = 'scoped memory for tpu_custom_call.1']
    #allocation5 [shape = 'u8[1024]{0}', space=vmem, size = 0x400, scoped, tag = 'input window, operand 1']
    #allocation6 [shape = 's32[2]{0}', space=sflag, size = 0x8, scoped, tag = 'scoped memory for tpu_custom_call.1']
    #allocation7 [shape = 'u8[262144]{0}', space=vmem, size = 0x40000, scoped, tag = 'input window, operand 2']
    #allocation8 [shape = 'u8[262144]{0}', space=vmem, size = 0x40000, scoped, tag = 'output window, operand 0']
    %8 = vsyncpa [#allocation3], 0
    %s9 = scalar_lea.sflag [#allocation3], 1
    %10 = vsyncpa %s9, 0
    %11 = vsyncpa [#allocation6], 0
    %s12 = scalar_lea.sflag [#allocation6], 1
    %13 = vsyncpa %s12, 0
    %14 = vsyncpa [#allocation4], 0
    %s15 = scalar_lea.sflag [#allocation4], 1
    %16 = vsyncpa %s15, 0
    loop: start=0, step=1, limit=4
    $region2: #{tpu_custom_call.1} parent=1 // loop_pre_header
      _
    $region3: #{tpu_custom_call.1} parent=1 // loop_header
      %s18 = sphi 0, %s22
      %p19 = scmp.ge.s32.totalorder %s18, 4
      %s25 = sphi 0, %s37
      %s26 = sphi 0, %s33
      %s27 = sphi 0, %s25
      %s28 = sphi 0, %s26
      %s29 = sphi 0, %s27
      %s30 = sphi 0, %s28
      %s40 = sphi 0, %s42
      %s43 = sphi 0, %s40
      %s44 = sphi 0, %s43
      %s60 = sphi 0, %s44
      %s66 = sphi 0, %s68
      %s69 = sphi 0, %s66
      %s70 = sphi 0, %s69
      %s86 = sphi 0, %s70
      %s94 = sphi 0, %s96
      %s97 = sphi 0, %s94
      %s98 = sphi 0, %s97
      %s114 = sphi 0, %s98
      %s122 = sphi 0, %s124
      %s125 = sphi 0, %s122
      %s126 = sphi 0, %s125
      %s142 = sphi 0, %s126
    $region4: #{tpu_custom_call.1} parent=1 // loop_header_branch
      %21 = sbr.rel (%p19) target = $region8
    $region5: #{tpu_custom_call.1} parent=1 // loop_body
      %s23 = ssub.s32 %s18, 1
      %s24 = ssub.s32 %s18, 2
      %s31 = sadd.s32 1, %s26
      %p32 = scmp.ge.s32.totalorder %s31, 1
      %s33 = scalar_select %p32, 0, %s31
      %s34 = sadd.s32 1, %s25
      %s35 = scalar_select %p32, %s34, %s25
      %p36 = scmp.ge.s32.totalorder %s35, 2
      %s37 = scalar_select %p36, 0, %s35
      %s38 = ssub.s32 %s25, %s37
      %p39 = scmp.eq.s32.totalorder %s38, 0
      %s41 = sadd.s32 %s40, 1
      %s42 = scalar_select %p39, %s40, %s41
      %p45 = pneg %p39
      %p46 = scmp.eq.s32.totalorder %s18, 1
      %p47 = por %p45, %p46
      %p48 = scmp.ne.s32.totalorder %s40, %s43
      %p49 = scmp.eq.s32.totalorder %s18, 0
      %p50 = por %p48, %p49
      %p51 = scmp.ne.s32.totalorder %s40, %s43
      %p52 = scmp.eq.s32.totalorder %s23, 1
      %p53 = por %p51, %p52
      %p54 = scmp.ne.s32.totalorder %s43, %s44
      %p55 = scmp.eq.s32.totalorder %s23, 0
      %p56 = por %p54, %p55
      %p57 = scmp.ne.s32.totalorder %s43, %s44
      %p58 = scmp.eq.s32.totalorder %s24, 1
      %p59 = por %p57, %p58
      %p61 = scmp.ne.s32.totalorder %s44, %s60
      %p62 = scmp.eq.s32.totalorder %s24, 0
      %p63 = por %p61, %p62
      %s64 = ssub.s32 %s25, %s37
      %p65 = scmp.eq.s32.totalorder %s64, 0
      %s67 = sadd.s32 %s66, 1
      %s68 = scalar_select %p65, %s66, %s67
      %p71 = pneg %p65
      %p72 = scmp.eq.s32.totalorder %s18, 1
      %p73 = por %p71, %p72
      %p74 = scmp.ne.s32.totalorder %s66, %s69
      %p75 = scmp.eq.s32.totalorder %s18, 0
      %p76 = por %p74, %p75
      %p77 = scmp.ne.s32.totalorder %s66, %s69
      %p78 = scmp.eq.s32.totalorder %s23, 1
      %p79 = por %p77, %p78
      %p80 = scmp.ne.s32.totalorder %s69, %s70
      %p81 = scmp.eq.s32.totalorder %s23, 0
      %p82 = por %p80, %p81
      %p83 = scmp.ne.s32.totalorder %s69, %s70
      %p84 = scmp.eq.s32.totalorder %s24, 1
      %p85 = por %p83, %p84
      %p87 = scmp.ne.s32.totalorder %s70, %s86
      %p88 = scmp.eq.s32.totalorder %s24, 0
      %p89 = por %p87, %p88
      %s90 = ssub.s32 %s25, %s37
      %s91 = ssub.s32 %s26, %s33
      %s92 = sor.u32 %s90, %s91
      %p93 = scmp.eq.s32.totalorder %s92, 0
      %s95 = sadd.s32 %s94, 1
      %s96 = scalar_select %p93, %s94, %s95
      %p99 = pneg %p93
      %p100 = scmp.eq.s32.totalorder %s18, 1
      %p101 = por %p99, %p100
      %p102 = scmp.ne.s32.totalorder %s94, %s97
      %p103 = scmp.eq.s32.totalorder %s18, 0
      %p104 = por %p102, %p103
      %p105 = scmp.ne.s32.totalorder %s94, %s97
      %p106 = scmp.eq.s32.totalorder %s23, 1
      %p107 = por %p105, %p106
      %p108 = scmp.ne.s32.totalorder %s97, %s98
      %p109 = scmp.eq.s32.totalorder %s23, 0
      %p110 = por %p108, %p109
      %p111 = scmp.ne.s32.totalorder %s97, %s98
      %p112 = scmp.eq.s32.totalorder %s24, 1
      %p113 = por %p111, %p112
      %p115 = scmp.ne.s32.totalorder %s98, %s114
      %p116 = scmp.eq.s32.totalorder %s24, 0
      %p117 = por %p115, %p116
      %s118 = ssub.s32 %s25, %s37
      %s119 = ssub.s32 %s26, %s33
      %s120 = sor.u32 %s118, %s119
      %p121 = scmp.eq.s32.totalorder %s120, 0
      %s123 = sadd.s32 %s122, 1
      %s124 = scalar_select %p121, %s122, %s123
      %p127 = pneg %p121
      %p128 = scmp.eq.s32.totalorder %s18, 1
      %p129 = por %p127, %p128
      %p130 = scmp.ne.s32.totalorder %s122, %s125
      %p131 = scmp.eq.s32.totalorder %s18, 0
      %p132 = por %p130, %p131
      %p133 = scmp.ne.s32.totalorder %s122, %s125
      %p134 = scmp.eq.s32.totalorder %s23, 1
      %p135 = por %p133, %p134
      %p136 = scmp.ne.s32.totalorder %s125, %s126
      %p137 = scmp.eq.s32.totalorder %s23, 0
      %p138 = por %p136, %p137
      %p139 = scmp.ne.s32.totalorder %s125, %s126
      %p140 = scmp.eq.s32.totalorder %s24, 1
      %p141 = por %p139, %p140
      %p143 = scmp.ne.s32.totalorder %s126, %s142
      %p144 = scmp.eq.s32.totalorder %s24, 0
      %p145 = por %p143, %p144
      %p146 = scmp.le.s32.totalorder 1, %s18
      %p147 = scmp.lt.s32.totalorder %s18, 3
      %p148 = pnand %p146, %p147
      %p149 = pneg %p148
      // Predicated region
      $region9: #{tpu_custom_call.1} parent=5 // pred_check
        _
      $region10: #{tpu_custom_call.1} parent=5 // pred_check_branch
        %151 = sbr.rel (%p148) target = $region12
      $region11: #{tpu_custom_call.1} parent=5 // pred_region
        %s152 = ssub.s32 %s18, 1
      $region12: #{tpu_custom_call.1} parent=5 // pred_fallthru
        _
      %p153 = scmp.lt.s32.totalorder %s18, 2
      // Predicated region
      $region13: #{tpu_custom_call.1} parent=5 // pred_check
        %p154 = pneg %p153
      $region14: #{tpu_custom_call.1} parent=5 // pred_check_branch
        %156 = sbr.rel (%p154) target = $region16
      $region15: #{tpu_custom_call.1} parent=5 // pred_region
        // Predicated region
        $region17: #{tpu_custom_call.1} parent=15 // pred_check
          %p157 = pneg %p50
        $region18: #{tpu_custom_call.1} parent=15 // pred_check_branch
          %159 = sbr.rel (%p157) target = $region20
        $region19: #{tpu_custom_call.1} parent=15 // pred_region
          %s160 = sand.u32 %s40, 1
          %s161 = scalar_lea.sflag [#allocation3], %s160
          %s162 = sand.u32 %s40, 1
          %s163 = scalar_lea.vmem [#allocation2], %s162
          %s165 = ssub.s32 16, 16
          %166 = vsyncadd %s161, %s165
          %s167 = smul.addr %s25, 16
          %s168 = scalar_lea.hbm %s0, %s167
          %s170 = sshll.u32 %s163, 4
          %s171 = int_to_ptr.vmem [resolvable:$true] %s170
          %173 = dma.hbm_to_vmem [thread:$0]  %s168, 16, %s171, %s161
        $region20: #{tpu_custom_call.1} parent=15 // pred_fallthru
          _
        // Predicated region
        $region21: #{tpu_custom_call.1} parent=15 // pred_check
          %p174 = pneg %p76
        $region22: #{tpu_custom_call.1} parent=15 // pred_check_branch
          %176 = sbr.rel (%p174) target = $region24
        $region23: #{tpu_custom_call.1} parent=15 // pred_region
          %s177 = sand.u32 %s18, 1
          %s178 = scalar_lea.sflag [#allocation6], %s177
          %s179 = sand.u32 %s66, 1
          %s180 = scalar_lea.vmem [#allocation5], %s179
          %s182 = ssub.s32 16, 16
          %183 = vsyncadd %s178, %s182
          %s184 = smul.addr %s25, 16
          %s185 = scalar_lea.hbm %s1, %s184
          %s187 = sshll.u32 %s180, 4
          %s188 = int_to_ptr.vmem [resolvable:$true] %s187
          %190 = dma.hbm_to_vmem [thread:$0]  %s185, 16, %s188, %s178
        $region24: #{tpu_custom_call.1} parent=15 // pred_fallthru
          _
        // Predicated region
        $region25: #{tpu_custom_call.1} parent=15 // pred_check
          %p191 = pneg %p104
        $region26: #{tpu_custom_call.1} parent=15 // pred_check_branch
          %193 = sbr.rel (%p191) target = $region28
        $region27: #{tpu_custom_call.1} parent=15 // pred_region
          %s194 = sand.u32 %s18, 1
          %s195 = scalar_lea.sflag [#allocation6], %s194
          %s196 = sand.u32 %s94, 1
          %s197 = smul.addr %s196, 256
          %s198 = scalar_lea.vmem [#allocation7], %s197
          %s199 = smul.u32 32, %s26
          %s201 = ssub.s32 4096, 4096
          %202 = vsyncadd %s195, %s201
          %s203 = smul.addr %s25, 32
          %s204 = sadd.s32 %s199, %s203
          %s205 = smul.addr %s204, 128
          %s206 = scalar_lea.hbm %s2, %s205
          %s207 = sshll.u32 %s198, 4
          %s208 = int_to_ptr.vmem [resolvable:$true] %s207
          %213 = dma.hbm_to_vmem [thread:$0]  %s206, 4096, %s208, %s195, 128, 128, 8
        $region28: #{tpu_custom_call.1} parent=15 // pred_fallthru
          _
      $region16: #{tpu_custom_call.1} parent=5 // pred_fallthru
        _
      %p214 = scmp.le.s32.totalorder 1, %s18
      %p215 = scmp.lt.s32.totalorder %s18, 3
      %p216 = pnand %p214, %p215
      %p217 = pneg %p216
      // Predicated region
      $region29: #{tpu_custom_call.1} parent=5 // pred_check
        _
      $region30: #{tpu_custom_call.1} parent=5 // pred_check_branch
        %219 = sbr.rel (%p216) target = $region32
      $region31: #{tpu_custom_call.1} parent=5 // pred_region
        %s220 = ssub.s32 %s18, 1
        %s221 = sand.u32 %s43, 1
        %s222 = scalar_lea.sflag [#allocation3], %s221
        %s223 = sand.u32 %s43, 1
        %s224 = scalar_lea.vmem [#allocation2], %s223
        // Predicated region
        $region33: #{tpu_custom_call.1} parent=31 // pred_check
          %p225 = pneg %p56
        $region34: #{tpu_custom_call.1} parent=31 // pred_check_branch
          %227 = sbr.rel (%p225) target = $region36
        $region35: #{tpu_custom_call.1} parent=31 // pred_region
          %228 = dma.done %s222, 16
        $region36: #{tpu_custom_call.1} parent=31 // pred_fallthru
          _
        %s229 = sand.u32 %s23, 1
        %s230 = scalar_lea.sflag [#allocation6], %s229
        %s231 = sand.u32 %s69, 1
        %s232 = scalar_lea.vmem [#allocation5], %s231
        // Predicated region
        $region37: #{tpu_custom_call.1} parent=31 // pred_check
          %p233 = pneg %p82
        $region38: #{tpu_custom_call.1} parent=31 // pred_check_branch
          %235 = sbr.rel (%p233) target = $region40
        $region39: #{tpu_custom_call.1} parent=31 // pred_region
          %236 = dma.done %s230, 16
        $region40: #{tpu_custom_call.1} parent=31 // pred_fallthru
          _
        %s237 = sand.u32 %s23, 1
        %s238 = scalar_lea.sflag [#allocation6], %s237
        %s239 = sand.u32 %s97, 1
        %s240 = smul.addr %s239, 256
        %s241 = scalar_lea.vmem [#allocation7], %s240
        // Predicated region
        $region41: #{tpu_custom_call.1} parent=31 // pred_check
          %p242 = pneg %p110
        $region42: #{tpu_custom_call.1} parent=31 // pred_check_branch
          %244 = sbr.rel (%p242) target = $region44
        $region43: #{tpu_custom_call.1} parent=31 // pred_region
          %245 = dma.done %s238, 4096
        $region44: #{tpu_custom_call.1} parent=31 // pred_fallthru
          _
        %s246 = sand.u32 %s43, 1
        %s247 = scalar_lea.sflag [#allocation3], %s246
        %s248 = sand.u32 %s43, 1
        %s249 = scalar_lea.vmem [#allocation2], %s248
        %p250 = pneg %p56
        %p251 = pneg %p53
        %s252 = sand.u32 %s23, 1
        %s253 = scalar_lea.sflag [#allocation6], %s252
        %s254 = sand.u32 %s69, 1
        %s255 = scalar_lea.vmem [#allocation5], %s254
        %p256 = pneg %p82
        %p257 = pneg %p79
        %s258 = sand.u32 %s23, 1
        %s259 = scalar_lea.sflag [#allocation6], %s258
        %s260 = sand.u32 %s97, 1
        %s261 = smul.addr %s260, 256
        %s262 = scalar_lea.vmem [#allocation7], %s261
        %p263 = pneg %p110
        %p264 = pneg %p107
        %p265 = pneg %p138
        %p266 = pneg %p135
        %s267 = sand.u32 %s125, 1
        %s268 = scalar_lea.sflag [#allocation4], %s267
        %s269 = sand.u32 %s125, 1
        %s270 = smul.addr %s269, 256
        %s271 = scalar_lea.vmem [#allocation8], %s270
        %s272 = smul.u32 32, %s28
        %s273 = smul.u32 32, %s28
        %v274 = vld [vmem:[%s241] sm:$0xff]
        %v275 = vld [vmem:[%s241 + $0x8] sm:$0xff]
        %v276 = vld [vmem:[%s241 + $0x10] sm:$0xff]
        %v277 = vld [vmem:[%s241 + $0x18] sm:$0xff]
        %v278 = vld [vmem:[%s241 + $0x20] sm:$0xff]
        %v279 = vld [vmem:[%s241 + $0x28] sm:$0xff]
        %v280 = vld [vmem:[%s241 + $0x30] sm:$0xff]
        %v281 = vld [vmem:[%s241 + $0x38] sm:$0xff]
        %v282 = vld [vmem:[%s241 + $0x40] sm:$0xff]
        %v283 = vld [vmem:[%s241 + $0x48] sm:$0xff]
        %v284 = vld [vmem:[%s241 + $0x50] sm:$0xff]
        %v285 = vld [vmem:[%s241 + $0x58] sm:$0xff]
        %v286 = vld [vmem:[%s241 + $0x60] sm:$0xff]
        %v287 = vld [vmem:[%s241 + $0x68] sm:$0xff]
        %v288 = vld [vmem:[%s241 + $0x70] sm:$0xff]
        %v289 = vld [vmem:[%s241 + $0x78] sm:$0xff]
        %v290 = vld [vmem:[%s241 + $0x80] sm:$0xff]
        %v291 = vld [vmem:[%s241 + $0x88] sm:$0xff]
        %v292 = vld [vmem:[%s241 + $0x90] sm:$0xff]
        %v293 = vld [vmem:[%s241 + $0x98] sm:$0xff]
        %v294 = vld [vmem:[%s241 + $0xa0] sm:$0xff]
        %v295 = vld [vmem:[%s241 + $0xa8] sm:$0xff]
        %v296 = vld [vmem:[%s241 + $0xb0] sm:$0xff]
        %v297 = vld [vmem:[%s241 + $0xb8] sm:$0xff]
        %v298 = vld [vmem:[%s241 + $0xc0] sm:$0xff]
        %v299 = vld [vmem:[%s241 + $0xc8] sm:$0xff]
        %v300 = vld [vmem:[%s241 + $0xd0] sm:$0xff]
        %v301 = vld [vmem:[%s241 + $0xd8] sm:$0xff]
        %v302 = vld [vmem:[%s241 + $0xe0] sm:$0xff]
        %v303 = vld [vmem:[%s241 + $0xe8] sm:$0xff]
        %v304 = vld [vmem:[%s241 + $0xf0] sm:$0xff]
        %v305 = vld [vmem:[%s241 + $0xf8] sm:$0xff]
        %v306 = vld [vmem:[%s224] sm:$0x1]
        %v308 = vlaneseq
        %v309 = vshrl.u32 %v308, 7
        %v310 = vsub.s32 0, %v309
        %v311 = vrot.slane %v306, %v310
        %v313 = vmul.f32 %v274, %v311
        %v314 = vmul.f32 %v275, %v311
        %v315 = vmul.f32 %v276, %v311
        %v316 = vmul.f32 %v277, %v311
        %v317 = vmul.f32 %v278, %v311
        %v318 = vmul.f32 %v279, %v311
        %v319 = vmul.f32 %v280, %v311
        %v320 = vmul.f32 %v281, %v311
        %v321 = vmul.f32 %v282, %v311
        %v322 = vmul.f32 %v283, %v311
        %v323 = vmul.f32 %v284, %v311
        %v324 = vmul.f32 %v285, %v311
        %v325 = vmul.f32 %v286, %v311
        %v326 = vmul.f32 %v287, %v311
        %v327 = vmul.f32 %v288, %v311
        %v328 = vmul.f32 %v289, %v311
        %v329 = vmul.f32 %v290, %v311
        %v330 = vmul.f32 %v291, %v311
        %v331 = vmul.f32 %v292, %v311
        %v332 = vmul.f32 %v293, %v311
        %v333 = vmul.f32 %v294, %v311
        %v334 = vmul.f32 %v295, %v311
        %v335 = vmul.f32 %v296, %v311
        %v336 = vmul.f32 %v297, %v311
        %v337 = vmul.f32 %v298, %v311
        %v338 = vmul.f32 %v299, %v311
        %v339 = vmul.f32 %v300, %v311
        %v340 = vmul.f32 %v301, %v311
        %v341 = vmul.f32 %v302, %v311
        %v342 = vmul.f32 %v303, %v311
        %v343 = vmul.f32 %v304, %v311
        %v344 = vmul.f32 %v305, %v311
        %v345 = vld [vmem:[%s232] sm:$0x1]
        %v347 = vlaneseq
        %v348 = vshrl.u32 %v347, 7
        %v349 = vsub.s32 0, %v348
        %v350 = vrot.slane %v345, %v349
        %v352 = vadd.f32 %v313, %v350
        %v353 = vadd.f32 %v314, %v350
        %v354 = vadd.f32 %v315, %v350
        %v355 = vadd.f32 %v316, %v350
        %v356 = vadd.f32 %v317, %v350
        %v357 = vadd.f32 %v318, %v350
        %v358 = vadd.f32 %v319, %v350
        %v359 = vadd.f32 %v320, %v350
        %v360 = vadd.f32 %v321, %v350
        %v361 = vadd.f32 %v322, %v350
        %v362 = vadd.f32 %v323, %v350
        %v363 = vadd.f32 %v324, %v350
        %v364 = vadd.f32 %v325, %v350
        %v365 = vadd.f32 %v326, %v350
        %v366 = vadd.f32 %v327, %v350
        %v367 = vadd.f32 %v328, %v350
        %v368 = vadd.f32 %v329, %v350
        %v369 = vadd.f32 %v330, %v350
        %v370 = vadd.f32 %v331, %v350
        %v371 = vadd.f32 %v332, %v350
        %v372 = vadd.f32 %v333, %v350
        %v373 = vadd.f32 %v334, %v350
        %v374 = vadd.f32 %v335, %v350
        %v375 = vadd.f32 %v336, %v350
        %v376 = vadd.f32 %v337, %v350
        %v377 = vadd.f32 %v338, %v350
        %v378 = vadd.f32 %v339, %v350
        %v379 = vadd.f32 %v340, %v350
        %v380 = vadd.f32 %v341, %v350
        %v381 = vadd.f32 %v342, %v350
        %v382 = vadd.f32 %v343, %v350
        %v383 = vadd.f32 %v344, %v350
        %384 = vst [vmem:[%s271] sm:$0xff] %v352
        %385 = vst [vmem:[%s271 + $0x8] sm:$0xff] %v353
        %386 = vst [vmem:[%s271 + $0x10] sm:$0xff] %v354
        %387 = vst [vmem:[%s271 + $0x18] sm:$0xff] %v355
        %388 = vst [vmem:[%s271 + $0x20] sm:$0xff] %v356
        %389 = vst [vmem:[%s271 + $0x28] sm:$0xff] %v357
        %390 = vst [vmem:[%s271 + $0x30] sm:$0xff] %v358
        %391 = vst [vmem:[%s271 + $0x38] sm:$0xff] %v359
        %392 = vst [vmem:[%s271 + $0x40] sm:$0xff] %v360
        %393 = vst [vmem:[%s271 + $0x48] sm:$0xff] %v361
        %394 = vst [vmem:[%s271 + $0x50] sm:$0xff] %v362
        %395 = vst [vmem:[%s271 + $0x58] sm:$0xff] %v363
        %396 = vst [vmem:[%s271 + $0x60] sm:$0xff] %v364
        %397 = vst [vmem:[%s271 + $0x68] sm:$0xff] %v365
        %398 = vst [vmem:[%s271 + $0x70] sm:$0xff] %v366
        %399 = vst [vmem:[%s271 + $0x78] sm:$0xff] %v367
        %400 = vst [vmem:[%s271 + $0x80] sm:$0xff] %v368
        %401 = vst [vmem:[%s271 + $0x88] sm:$0xff] %v369
        %402 = vst [vmem:[%s271 + $0x90] sm:$0xff] %v370
        %403 = vst [vmem:[%s271 + $0x98] sm:$0xff] %v371
        %404 = vst [vmem:[%s271 + $0xa0] sm:$0xff] %v372
        %405 = vst [vmem:[%s271 + $0xa8] sm:$0xff] %v373
        %406 = vst [vmem:[%s271 + $0xb0] sm:$0xff] %v374
        %407 = vst [vmem:[%s271 + $0xb8] sm:$0xff] %v375
        %408 = vst [vmem:[%s271 + $0xc0] sm:$0xff] %v376
        %409 = vst [vmem:[%s271 + $0xc8] sm:$0xff] %v377
        %410 = vst [vmem:[%s271 + $0xd0] sm:$0xff] %v378
        %411 = vst [vmem:[%s271 + $0xd8] sm:$0xff] %v379
        %412 = vst [vmem:[%s271 + $0xe0] sm:$0xff] %v380
        %413 = vst [vmem:[%s271 + $0xe8] sm:$0xff] %v381
        %414 = vst [vmem:[%s271 + $0xf0] sm:$0xff] %v382
        %415 = vst [vmem:[%s271 + $0xf8] sm:$0xff] %v383
        %s416 = sand.u32 %s125, 1
        %s417 = scalar_lea.sflag [#allocation4], %s416
        %s418 = sand.u32 %s125, 1
        %s419 = smul.addr %s418, 256
        %s420 = scalar_lea.vmem [#allocation8], %s419
        // Predicated region
        $region45: #{tpu_custom_call.1} parent=31 // pred_check
          %p421 = pneg %p135
        $region46: #{tpu_custom_call.1} parent=31 // pred_check_branch
          %423 = sbr.rel (%p421) target = $region48
        $region47: #{tpu_custom_call.1} parent=31 // pred_region
          %s424 = smul.u32 32, %s28
          %s426 = ssub.s32 4096, 4096
          %427 = vsyncadd %s417, %s426
          %s428 = smul.addr %s27, 32
          %s429 = sadd.s32 %s424, %s428
          %s430 = smul.addr %s429, 128
          %s431 = scalar_lea.hbm %s3, %s430
          %s432 = sshll.u32 %s420, 4
          %s433 = int_to_ptr.vmem [resolvable:$true] %s432
          %438 = dma.vmem_to_hbm [thread:$0]  %s433, 4096, %s431, %s417, 128, 128, 8
        $region48: #{tpu_custom_call.1} parent=31 // pred_fallthru
          _
      $region32: #{tpu_custom_call.1} parent=5 // pred_fallthru
        _
      %p439 = scmp.le.s32.totalorder 2, %s18
      // Predicated region
      $region49: #{tpu_custom_call.1} parent=5 // pred_check
        %p440 = pneg %p439
      $region50: #{tpu_custom_call.1} parent=5 // pred_check_branch
        %442 = sbr.rel (%p440) target = $region52
      $region51: #{tpu_custom_call.1} parent=5 // pred_region
        %s443 = ssub.s32 %s18, 2
        // Predicated region
        $region53: #{tpu_custom_call.1} parent=51 // pred_check
          %p444 = pneg %p141
        $region54: #{tpu_custom_call.1} parent=51 // pred_check_branch
          %446 = sbr.rel (%p444) target = $region56
        $region55: #{tpu_custom_call.1} parent=51 // pred_region
          %s447 = sand.u32 %s126, 1
          %s448 = scalar_lea.sflag [#allocation4], %s447
          %s449 = sand.u32 %s126, 1
          %s450 = smul.addr %s449, 256
          %s451 = scalar_lea.vmem [#allocation8], %s450
          %452 = dma.done %s448, 4096
        $region56: #{tpu_custom_call.1} parent=51 // pred_fallthru
          _
      $region52: #{tpu_custom_call.1} parent=5 // pred_fallthru
        _
    $region6: #{tpu_custom_call.1} parent=1 // loop_footer
      %s22 = sadd.s32 1, %s18
    $region7: #{tpu_custom_call.1} parent=1 // loop_footer_branch
      %17 = sbr.rel target = $region3
    $region8: #{tpu_custom_call.1} parent=1 // loop_exit
      _
    %453 = vsyncpa [#allocation3], 1
    %s454 = scalar_lea.sflag [#allocation3], 1
    %455 = vsyncpa %s454, 1
    %456 = vsyncpa [#allocation6], 1
    %s457 = scalar_lea.sflag [#allocation6], 1
    %458 = vsyncpa %s457, 1
    %459 = vsyncpa [#allocation4], 1
    %s460 = scalar_lea.sflag [#allocation4], 1
    %461 = vsyncpa %s460, 1

</llo_original>
